<compile_context>
chip_gen: v7x
topology: tpu7x:2x2x1
jax: 0.10.0
libtpu: 0.0.40
codegen_flags: <defaults>
</compile_context>

<pallas_src>
import functools

import jax
import jax.numpy as jnp
from jax.experimental import pallas as pl
from jax.experimental.pallas import tpu as pltpu


def _row_scan(x, combine):
    """Cyclic doubling tree over the lane (last) axis.

    After log2(n) roll+combine steps every lane holds combine(...) over the whole
    row. Last dim must be a power of two (it is padded to 128 in the wrapper).
    Uses the XLU (roll) + VPU (combine) slots instead of the single EUP slot.
    """
    n = x.shape[-1]
    shift = 1
    while shift < n:
        x = combine(x, pltpu.roll(x, shift, axis=1))
        shift *= 2
    return x


def _bp_kernel(lv_ref, b_ref, h_ref, w_ref, s_ref, out_ref, *, iterations):
    lv = lv_ref[...]          # (1, Np)
    b = b_ref[...]            # (1, Np)
    h = h_ref[...]            # (Cp, Np) float32 in {0, 1}; padding rows/cols are 0
    w = w_ref[...]            # (Cp, Np)
    s = s_ref[...]            # (Cp, 1)  float32 in {0, 1}

    # ---- loop-invariant hoists (JAX does not CSE these across the unroll) ----
    base = lv * b                                          # l_v[v] * b[v]    -> (1, Np)
    hw = h * w                                             # edge weights     -> (Cp, Np)
    edge = h == 1.0                                        # edge mask        -> (Cp, Np)
    sign_c = 1.0 - 2.0 * s                                 # (-1) ** s_c[c]   -> (Cp, 1)
    row_valid = jnp.max(h, axis=1, keepdims=True) > 0.0    # padded check rows -> False

    C, N = h.shape
    mu_cv = jnp.zeros((C, N), jnp.float32)   # mu_c_to_v[c, v]
    mu_vc = jnp.zeros((C, N), jnp.float32)   # mu_v_to_c[v, c] (transposed storage)

    for _ in range(iterations):
        # ---- variable -> check update ----
        # mu_v_to_c_new[v, c] = l_v[v]*b[v] + sum_{c' edge, c'!=c} mu_c_to_v[c',v]*w[c',v]
        contrib = hw * mu_cv                               # (Cp, Np)
        total = jnp.sum(contrib, axis=0, keepdims=True)    # (1, Np) sublane reduce
        mu_vc_new = base + total - contrib                 # exclude-self sum

        # ---- check -> variable update (uses OLD mu_vc, exactly like the reference) ----
        tnh = jnp.tanh(mu_vc * 0.5)                        # tanh(mu_v_to_c / 2)
        f = jnp.where(edge, tnh, 1.0)                      # 1.0 off-edge -> no-op factor
        is_zero = f == 0.0
        safe_f = jnp.where(is_zero, 1.0, f)
        zero_f = jnp.where(is_zero, 1.0, 0.0)

        # Full-row product of the non-zero factors and exact-zero count, computed with
        # roll trees (carries the sign for free; no log/abs/exp/mod needed).
        p_nz = _row_scan(safe_f, lambda a, bb: a * bb)     # (Cp, Np)
        n_zero = _row_scan(zero_f, lambda a, bb: a + bb)   # (Cp, Np)

        # product over v' != v of f[c, v'] (exclude-self; exact-zero path preserved)
        excl = jnp.where(
            is_zero,
            jnp.where(n_zero > 1.0, 0.0, p_nz),
            jnp.where(n_zero > 0.0, 0.0, p_nz / safe_f),
        )
        excl = jnp.where(row_valid, excl, 0.0)             # keep padded rows finite

        # (-1)^s_c * 2 * atanh(x), with 2*atanh(x) folded into log((1+x)/(1-x))
        mu_cv_new = sign_c * jnp.log((1.0 + excl) / (1.0 - excl))

        mu_vc = mu_vc_new
        mu_cv = mu_cv_new

    # ---- marginalization + hf_sigmoid:  1/(exp(x)+1) == sigmoid(-x) (stable form) ----
    marg = base + jnp.sum(hw * mu_cv, axis=0, keepdims=True)   # (1, Np)
    e = jnp.exp(-jnp.abs(marg))
    sig = jnp.where(marg >= 0.0, e / (1.0 + e), 1.0 / (1.0 + e))
    out_ref[...] = jnp.broadcast_to(sig, out_ref.shape)


def belief_propagation(l_v, h, s_c, w, b, iterations):
    """Pallas implementation of BeliefPropagation.forward(l_v, h, s_c, iterations)."""
    C, N = h.shape
    n_pad = max(128, pl.next_power_of_2(N))   # lane-dense last dim (power of two for roll tree)
    c_pad = max(8, pl.cdiv(C, 8) * 8)         # sublane-aligned check dimension
    out_rows = 8                              # lane-dense (8, n_pad) output slab

    lv2 = jnp.zeros((1, n_pad), jnp.float32).at[0, :N].set(l_v.astype(jnp.float32))
    b2 = jnp.zeros((1, n_pad), jnp.float32).at[0, :N].set(b.astype(jnp.float32))
    h2 = jnp.zeros((c_pad, n_pad), jnp.float32).at[:C, :N].set(h.astype(jnp.float32))
    w2 = jnp.zeros((c_pad, n_pad), jnp.float32).at[:C, :N].set(w.astype(jnp.float32))
    s2 = jnp.zeros((c_pad, 1), jnp.float32).at[:C, 0].set(s_c.astype(jnp.float32))

    kernel = functools.partial(_bp_kernel, iterations=iterations)
    vmem = pl.BlockSpec(memory_space=pltpu.MemorySpace.VMEM)
    cost = pl.CostEstimate(
        flops=int(iterations) * c_pad * n_pad * 30,
        transcendentals=int(iterations) * c_pad * n_pad * 3,
        bytes_accessed=4 * (2 * n_pad + 2 * c_pad * n_pad + c_pad + out_rows * n_pad),
    )

    # TODO(synk): for many codewords, add a leading batch grid axis with
    # dimension_semantics=("parallel",) so both v7x TensorCores are used.
    out = pl.pallas_call(
        kernel,
        out_shape=jax.ShapeDtypeStruct((out_rows, n_pad), jnp.float32),
        in_specs=[vmem, vmem, vmem, vmem, vmem],
        out_specs=vmem,
        cost_estimate=cost,
    )(lv2, b2, h2, w2, s2)
    return out[0, :N]


if __name__ == "__main__":
    iterations = 5
    num_nodes = 30   # N (variable nodes), matches n = 30 in the reference
    num_edges = 15   # C (check nodes) == s_c.size(0)

    key = jax.random.PRNGKey(0)
    kb, kw, kh, ks = jax.random.split(key, 4)

    # Deterministic "parameters" (torch.rand -> uniform [0, 1))
    b_param = jax.random.uniform(kb, (num_nodes,), dtype=jnp.float32)
    w_param = jax.random.uniform(kw, (num_edges, num_nodes), dtype=jnp.float32)

    # Inputs: LLR vector, binary parity-check matrix h (C, N), syndrome s_c (C,)
    l_v = jnp.full((num_nodes,), 3.74899243611, dtype=jnp.float32)
    h = (jax.random.uniform(kh, (num_edges, num_nodes)) < 0.35).astype(jnp.float32)
    # guarantee each check row has degree >= 2 (avoids atanh(1) = inf, like a real LDPC code)
    h = h.at[:, 0].set(1.0).at[:, 1].set(1.0)
    s_c = jax.random.bernoulli(ks, 0.5, (num_edges,)).astype(jnp.float32)

    out = belief_propagation(l_v, h, s_c, w_param, b_param, iterations)
    jax.block_until_ready(out)
    assert out.shape == (num_nodes,)
    print("KERNEL_OK")
</pallas_src>

<mosaic_0001>
module attributes {stable_mosaic.version = 11 : i64} {
  func.func @_bp_kernel(%arg0: memref<1x128xf32, #tpu.memory_space<vmem>>, %arg1: memref<1x128xf32, #tpu.memory_space<vmem>>, %arg2: memref<16x128xf32, #tpu.memory_space<vmem>>, %arg3: memref<16x128xf32, #tpu.memory_space<vmem>>, %arg4: memref<16x1xf32, #tpu.memory_space<vmem>>, %arg5: memref<8x128xf32, #tpu.memory_space<vmem>>) attributes {dimension_semantics = [], scalar_prefetch = 0 : i64, scratch_operands = 0 : i64, tpu.core_type = #tpu.core_type<tc>} {
    %c0 = arith.constant 0 : index
    %c0_0 = arith.constant 0 : index
    %0 = vector.load %arg0[%c0, %c0_0] : memref<1x128xf32, #tpu.memory_space<vmem>>, vector<1x128xf32>
    %c0_1 = arith.constant 0 : index
    %c0_2 = arith.constant 0 : index
    %1 = vector.load %arg1[%c0_1, %c0_2] : memref<1x128xf32, #tpu.memory_space<vmem>>, vector<1x128xf32>
    %c0_3 = arith.constant 0 : index
    %c0_4 = arith.constant 0 : index
    %2 = vector.load %arg2[%c0_3, %c0_4] : memref<16x128xf32, #tpu.memory_space<vmem>>, vector<16x128xf32>
    %c0_5 = arith.constant 0 : index
    %c0_6 = arith.constant 0 : index
    %3 = vector.load %arg3[%c0_5, %c0_6] : memref<16x128xf32, #tpu.memory_space<vmem>>, vector<16x128xf32>
    %c0_7 = arith.constant 0 : index
    %c0_8 = arith.constant 0 : index
    %4 = vector.load %arg4[%c0_7, %c0_8] : memref<16x1xf32, #tpu.memory_space<vmem>>, vector<16x1xf32>
    %5 = arith.mulf %0, %1 : vector<1x128xf32>
    %6 = arith.mulf %2, %3 : vector<16x128xf32>
    %cst = arith.constant 1.000000e+00 : f32
    %7 = vector.broadcast %cst : f32 to vector<16x128xf32>
    %8 = arith.cmpf oeq, %2, %7 : vector<16x128xf32>
    %cst_9 = arith.constant 2.000000e+00 : f32
    %9 = vector.broadcast %cst_9 : f32 to vector<16x1xf32>
    %10 = arith.mulf %9, %4 : vector<16x1xf32>
    %cst_10 = arith.constant 1.000000e+00 : f32
    %11 = vector.broadcast %cst_10 : f32 to vector<16x1xf32>
    %12 = arith.subf %11, %10 : vector<16x1xf32>
    %cst_11 = arith.constant dense<0xFF800000> : vector<16xf32>
    %13 = vector.multi_reduction <maximumf>, %2, %cst_11 [1] : vector<16x128xf32> to vector<16xf32>
    %14 = vector.shape_cast %13 : vector<16xf32> to vector<16x1xf32>
    %cst_12 = arith.constant 0.000000e+00 : f32
    %15 = vector.broadcast %cst_12 : f32 to vector<16x1xf32>
    %16 = arith.cmpf ogt, %14, %15 : vector<16x1xf32>
    %cst_13 = arith.constant 0.000000e+00 : f32
    %17 = vector.broadcast %cst_13 : f32 to vector<16x128xf32>
    %cst_14 = arith.constant 5.000000e-01 : f32
    %18 = vector.broadcast %cst_14 : f32 to vector<16x128xf32>
    %19 = arith.mulf %17, %18 : vector<16x128xf32>
    %20 = math.tanh %19 : vector<16x128xf32>
    %cst_15 = arith.constant 1.000000e+00 : f32
    %21 = vector.broadcast %cst_15 : f32 to vector<16x128xf32>
    %22 = arith.select %8, %20, %21 : vector<16x128xi1>, vector<16x128xf32>
    %cst_16 = arith.constant 0.000000e+00 : f32
    %23 = vector.broadcast %cst_16 : f32 to vector<16x128xf32>
    %24 = arith.cmpf oeq, %22, %23 : vector<16x128xf32>
    %cst_17 = arith.constant 1.000000e+00 : f32
    %25 = vector.broadcast %cst_17 : f32 to vector<16x128xf32>
    %26 = arith.select %24, %25, %22 : vector<16x128xi1>, vector<16x128xf32>
    %cst_18 = arith.constant 1.000000e+00 : f32
    %cst_19 = arith.constant 0.000000e+00 : f32
    %27 = vector.broadcast %cst_18 : f32 to vector<16x128xf32>
    %28 = vector.broadcast %cst_19 : f32 to vector<16x128xf32>
    %29 = arith.select %24, %27, %28 : vector<16x128xi1>, vector<16x128xf32>
    %c1_i32 = arith.constant 1 : i32
    %30 = tpu.dynamic_rotate %26 by %c1_i32 dim 1 : vector<16x128xf32>, i32 -> vector<16x128xf32>
    %31 = arith.mulf %26, %30 : vector<16x128xf32>
    %c2_i32 = arith.constant 2 : i32
    %32 = tpu.dynamic_rotate %31 by %c2_i32 dim 1 : vector<16x128xf32>, i32 -> vector<16x128xf32>
    %33 = arith.mulf %31, %32 : vector<16x128xf32>
    %c4_i32 = arith.constant 4 : i32
    %34 = tpu.dynamic_rotate %33 by %c4_i32 dim 1 : vector<16x128xf32>, i32 -> vector<16x128xf32>
    %35 = arith.mulf %33, %34 : vector<16x128xf32>
    %c8_i32 = arith.constant 8 : i32
    %36 = tpu.dynamic_rotate %35 by %c8_i32 dim 1 : vector<16x128xf32>, i32 -> vector<16x128xf32>
    %37 = arith.mulf %35, %36 : vector<16x128xf32>
    %c16_i32 = arith.constant 16 : i32
    %38 = tpu.dynamic_rotate %37 by %c16_i32 dim 1 : vector<16x128xf32>, i32 -> vector<16x128xf32>
    %39 = arith.mulf %37, %38 : vector<16x128xf32>
    %c32_i32 = arith.constant 32 : i32
    %40 = tpu.dynamic_rotate %39 by %c32_i32 dim 1 : vector<16x128xf32>, i32 -> vector<16x128xf32>
    %41 = arith.mulf %39, %40 : vector<16x128xf32>
    %c64_i32 = arith.constant 64 : i32
    %42 = tpu.dynamic_rotate %41 by %c64_i32 dim 1 : vector<16x128xf32>, i32 -> vector<16x128xf32>
    %43 = arith.mulf %41, %42 : vector<16x128xf32>
    %c1_i32_20 = arith.constant 1 : i32
    %44 = tpu.dynamic_rotate %29 by %c1_i32_20 dim 1 : vector<16x128xf32>, i32 -> vector<16x128xf32>
    %45 = arith.addf %29, %44 : vector<16x128xf32>
    %c2_i32_21 = arith.constant 2 : i32
    %46 = tpu.dynamic_rotate %45 by %c2_i32_21 dim 1 : vector<16x128xf32>, i32 -> vector<16x128xf32>
    %47 = arith.addf %45, %46 : vector<16x128xf32>
    %c4_i32_22 = arith.constant 4 : i32
    %48 = tpu.dynamic_rotate %47 by %c4_i32_22 dim 1 : vector<16x128xf32>, i32 -> vector<16x128xf32>
    %49 = arith.addf %47, %48 : vector<16x128xf32>
    %c8_i32_23 = arith.constant 8 : i32
    %50 = tpu.dynamic_rotate %49 by %c8_i32_23 dim 1 : vector<16x128xf32>, i32 -> vector<16x128xf32>
    %51 = arith.addf %49, %50 : vector<16x128xf32>
    %c16_i32_24 = arith.constant 16 : i32
    %52 = tpu.dynamic_rotate %51 by %c16_i32_24 dim 1 : vector<16x128xf32>, i32 -> vector<16x128xf32>
    %53 = arith.addf %51, %52 : vector<16x128xf32>
    %c32_i32_25 = arith.constant 32 : i32
    %54 = tpu.dynamic_rotate %53 by %c32_i32_25 dim 1 : vector<16x128xf32>, i32 -> vector<16x128xf32>
    %55 = arith.addf %53, %54 : vector<16x128xf32>
    %c64_i32_26 = arith.constant 64 : i32
    %56 = tpu.dynamic_rotate %55 by %c64_i32_26 dim 1 : vector<16x128xf32>, i32 -> vector<16x128xf32>
    %57 = arith.addf %55, %56 : vector<16x128xf32>
    %cst_27 = arith.constant 1.000000e+00 : f32
    %58 = vector.broadcast %cst_27 : f32 to vector<16x128xf32>
    %59 = arith.cmpf ogt, %57, %58 : vector<16x128xf32>
    %cst_28 = arith.constant 0.000000e+00 : f32
    %60 = vector.broadcast %cst_28 : f32 to vector<16x128xf32>
    %61 = arith.select %59, %60, %43 : vector<16x128xi1>, vector<16x128xf32>
    %cst_29 = arith.constant 0.000000e+00 : f32
    %62 = vector.broadcast %cst_29 : f32 to vector<16x128xf32>
    %63 = arith.cmpf ogt, %57, %62 : vector<16x128xf32>
    %64 = arith.divf %43, %26 : vector<16x128xf32>
    %cst_30 = arith.constant 0.000000e+00 : f32
    %65 = vector.broadcast %cst_30 : f32 to vector<16x128xf32>
    %66 = arith.select %63, %65, %64 : vector<16x128xi1>, vector<16x128xf32>
    %67 = arith.select %24, %61, %66 : vector<16x128xi1>, vector<16x128xf32>
    %cst_31 = arith.constant 0.000000e+00 : f32
    %68 = vector.shape_cast %16 : vector<16x1xi1> to vector<16x1xi1>
    %69 = vector.broadcast %68 : vector<16x1xi1> to vector<16x128xi1>
    %70 = vector.broadcast %cst_31 : f32 to vector<16x128xf32>
    %71 = arith.select %69, %67, %70 : vector<16x128xi1>, vector<16x128xf32>
    %cst_32 = arith.constant 1.000000e+00 : f32
    %72 = vector.broadcast %cst_32 : f32 to vector<16x128xf32>
    %73 = arith.addf %72, %71 : vector<16x128xf32>
    %cst_33 = arith.constant 1.000000e+00 : f32
    %74 = vector.broadcast %cst_33 : f32 to vector<16x128xf32>
    %75 = arith.subf %74, %71 : vector<16x128xf32>
    %76 = arith.divf %73, %75 : vector<16x128xf32>
    %77 = math.log %76 : vector<16x128xf32>
    %78 = vector.broadcast %12 : vector<16x1xf32> to vector<16x128xf32>
    %79 = arith.mulf %78, %77 : vector<16x128xf32>
    %80 = arith.mulf %6, %79 : vector<16x128xf32>
    %cst_34 = arith.constant dense<0.000000e+00> : vector<128xf32>
    %81 = vector.multi_reduction <add>, %80, %cst_34 [0] : vector<16x128xf32> to vector<128xf32>
    %82 = vector.shape_cast %81 : vector<128xf32> to vector<1x128xf32>
    %83 = arith.addf %5, %82 : vector<1x128xf32>
    %84 = vector.broadcast %83 : vector<1x128xf32> to vector<16x128xf32>
    %85 = arith.subf %84, %80 : vector<16x128xf32>
    %cst_35 = arith.constant 5.000000e-01 : f32
    %86 = vector.broadcast %cst_35 : f32 to vector<16x128xf32>
    %87 = arith.mulf %85, %86 : vector<16x128xf32>
    %88 = math.tanh %87 : vector<16x128xf32>
    %cst_36 = arith.constant 1.000000e+00 : f32
    %89 = vector.broadcast %cst_36 : f32 to vector<16x128xf32>
    %90 = arith.select %8, %88, %89 : vector<16x128xi1>, vector<16x128xf32>
    %cst_37 = arith.constant 0.000000e+00 : f32
    %91 = vector.broadcast %cst_37 : f32 to vector<16x128xf32>
    %92 = arith.cmpf oeq, %90, %91 : vector<16x128xf32>
    %cst_38 = arith.constant 1.000000e+00 : f32
    %93 = vector.broadcast %cst_38 : f32 to vector<16x128xf32>
    %94 = arith.select %92, %93, %90 : vector<16x128xi1>, vector<16x128xf32>
    %cst_39 = arith.constant 1.000000e+00 : f32
    %cst_40 = arith.constant 0.000000e+00 : f32
    %95 = vector.broadcast %cst_39 : f32 to vector<16x128xf32>
    %96 = vector.broadcast %cst_40 : f32 to vector<16x128xf32>
    %97 = arith.select %92, %95, %96 : vector<16x128xi1>, vector<16x128xf32>
    %c1_i32_41 = arith.constant 1 : i32
    %98 = tpu.dynamic_rotate %94 by %c1_i32_41 dim 1 : vector<16x128xf32>, i32 -> vector<16x128xf32>
    %99 = arith.mulf %94, %98 : vector<16x128xf32>
    %c2_i32_42 = arith.constant 2 : i32
    %100 = tpu.dynamic_rotate %99 by %c2_i32_42 dim 1 : vector<16x128xf32>, i32 -> vector<16x128xf32>
    %101 = arith.mulf %99, %100 : vector<16x128xf32>
    %c4_i32_43 = arith.constant 4 : i32
    %102 = tpu.dynamic_rotate %101 by %c4_i32_43 dim 1 : vector<16x128xf32>, i32 -> vector<16x128xf32>
    %103 = arith.mulf %101, %102 : vector<16x128xf32>
    %c8_i32_44 = arith.constant 8 : i32
    %104 = tpu.dynamic_rotate %103 by %c8_i32_44 dim 1 : vector<16x128xf32>, i32 -> vector<16x128xf32>
    %105 = arith.mulf %103, %104 : vector<16x128xf32>
    %c16_i32_45 = arith.constant 16 : i32
    %106 = tpu.dynamic_rotate %105 by %c16_i32_45 dim 1 : vector<16x128xf32>, i32 -> vector<16x128xf32>
    %107 = arith.mulf %105, %106 : vector<16x128xf32>
    %c32_i32_46 = arith.constant 32 : i32
    %108 = tpu.dynamic_rotate %107 by %c32_i32_46 dim 1 : vector<16x128xf32>, i32 -> vector<16x128xf32>
    %109 = arith.mulf %107, %108 : vector<16x128xf32>
    %c64_i32_47 = arith.constant 64 : i32
    %110 = tpu.dynamic_rotate %109 by %c64_i32_47 dim 1 : vector<16x128xf32>, i32 -> vector<16x128xf32>
    %111 = arith.mulf %109, %110 : vector<16x128xf32>
    %c1_i32_48 = arith.constant 1 : i32
    %112 = tpu.dynamic_rotate %97 by %c1_i32_48 dim 1 : vector<16x128xf32>, i32 -> vector<16x128xf32>
    %113 = arith.addf %97, %112 : vector<16x128xf32>
    %c2_i32_49 = arith.constant 2 : i32
    %114 = tpu.dynamic_rotate %113 by %c2_i32_49 dim 1 : vector<16x128xf32>, i32 -> vector<16x128xf32>
    %115 = arith.addf %113, %114 : vector<16x128xf32>
    %c4_i32_50 = arith.constant 4 : i32
    %116 = tpu.dynamic_rotate %115 by %c4_i32_50 dim 1 : vector<16x128xf32>, i32 -> vector<16x128xf32>
    %117 = arith.addf %115, %116 : vector<16x128xf32>
    %c8_i32_51 = arith.constant 8 : i32
    %118 = tpu.dynamic_rotate %117 by %c8_i32_51 dim 1 : vector<16x128xf32>, i32 -> vector<16x128xf32>
    %119 = arith.addf %117, %118 : vector<16x128xf32>
    %c16_i32_52 = arith.constant 16 : i32
    %120 = tpu.dynamic_rotate %119 by %c16_i32_52 dim 1 : vector<16x128xf32>, i32 -> vector<16x128xf32>
    %121 = arith.addf %119, %120 : vector<16x128xf32>
    %c32_i32_53 = arith.constant 32 : i32
    %122 = tpu.dynamic_rotate %121 by %c32_i32_53 dim 1 : vector<16x128xf32>, i32 -> vector<16x128xf32>
    %123 = arith.addf %121, %122 : vector<16x128xf32>
    %c64_i32_54 = arith.constant 64 : i32
    %124 = tpu.dynamic_rotate %123 by %c64_i32_54 dim 1 : vector<16x128xf32>, i32 -> vector<16x128xf32>
    %125 = arith.addf %123, %124 : vector<16x128xf32>
    %cst_55 = arith.constant 1.000000e+00 : f32
    %126 = vector.broadcast %cst_55 : f32 to vector<16x128xf32>
    %127 = arith.cmpf ogt, %125, %126 : vector<16x128xf32>
    %cst_56 = arith.constant 0.000000e+00 : f32
    %128 = vector.broadcast %cst_56 : f32 to vector<16x128xf32>
    %129 = arith.select %127, %128, %111 : vector<16x128xi1>, vector<16x128xf32>
    %cst_57 = arith.constant 0.000000e+00 : f32
    %130 = vector.broadcast %cst_57 : f32 to vector<16x128xf32>
    %131 = arith.cmpf ogt, %125, %130 : vector<16x128xf32>
    %132 = arith.divf %111, %94 : vector<16x128xf32>
    %cst_58 = arith.constant 0.000000e+00 : f32
    %133 = vector.broadcast %cst_58 : f32 to vector<16x128xf32>
    %134 = arith.select %131, %133, %132 : vector<16x128xi1>, vector<16x128xf32>
    %135 = arith.select %92, %129, %134 : vector<16x128xi1>, vector<16x128xf32>
    %cst_59 = arith.constant 0.000000e+00 : f32
    %136 = vector.shape_cast %16 : vector<16x1xi1> to vector<16x1xi1>
    %137 = vector.broadcast %136 : vector<16x1xi1> to vector<16x128xi1>
    %138 = vector.broadcast %cst_59 : f32 to vector<16x128xf32>
    %139 = arith.select %137, %135, %138 : vector<16x128xi1>, vector<16x128xf32>
    %cst_60 = arith.constant 1.000000e+00 : f32
    %140 = vector.broadcast %cst_60 : f32 to vector<16x128xf32>
    %141 = arith.addf %140, %139 : vector<16x128xf32>
    %cst_61 = arith.constant 1.000000e+00 : f32
    %142 = vector.broadcast %cst_61 : f32 to vector<16x128xf32>
    %143 = arith.subf %142, %139 : vector<16x128xf32>
    %144 = arith.divf %141, %143 : vector<16x128xf32>
    %145 = math.log %144 : vector<16x128xf32>
    %146 = vector.broadcast %12 : vector<16x1xf32> to vector<16x128xf32>
    %147 = arith.mulf %146, %145 : vector<16x128xf32>
    %148 = arith.mulf %6, %147 : vector<16x128xf32>
    %cst_62 = arith.constant dense<0.000000e+00> : vector<128xf32>
    %149 = vector.multi_reduction <add>, %148, %cst_62 [0] : vector<16x128xf32> to vector<128xf32>
    %150 = vector.shape_cast %149 : vector<128xf32> to vector<1x128xf32>
    %151 = arith.addf %5, %150 : vector<1x128xf32>
    %152 = vector.broadcast %151 : vector<1x128xf32> to vector<16x128xf32>
    %153 = arith.subf %152, %148 : vector<16x128xf32>
    %cst_63 = arith.constant 5.000000e-01 : f32
    %154 = vector.broadcast %cst_63 : f32 to vector<16x128xf32>
    %155 = arith.mulf %153, %154 : vector<16x128xf32>
    %156 = math.tanh %155 : vector<16x128xf32>
    %cst_64 = arith.constant 1.000000e+00 : f32
    %157 = vector.broadcast %cst_64 : f32 to vector<16x128xf32>
    %158 = arith.select %8, %156, %157 : vector<16x128xi1>, vector<16x128xf32>
    %cst_65 = arith.constant 0.000000e+00 : f32
    %159 = vector.broadcast %cst_65 : f32 to vector<16x128xf32>
    %160 = arith.cmpf oeq, %158, %159 : vector<16x128xf32>
    %cst_66 = arith.constant 1.000000e+00 : f32
    %161 = vector.broadcast %cst_66 : f32 to vector<16x128xf32>
    %162 = arith.select %160, %161, %158 : vector<16x128xi1>, vector<16x128xf32>
    %cst_67 = arith.constant 1.000000e+00 : f32
    %cst_68 = arith.constant 0.000000e+00 : f32
    %163 = vector.broadcast %cst_67 : f32 to vector<16x128xf32>
    %164 = vector.broadcast %cst_68 : f32 to vector<16x128xf32>
    %165 = arith.select %160, %163, %164 : vector<16x128xi1>, vector<16x128xf32>
    %c1_i32_69 = arith.constant 1 : i32
    %166 = tpu.dynamic_rotate %162 by %c1_i32_69 dim 1 : vector<16x128xf32>, i32 -> vector<16x128xf32>
    %167 = arith.mulf %162, %166 : vector<16x128xf32>
    %c2_i32_70 = arith.constant 2 : i32
    %168 = tpu.dynamic_rotate %167 by %c2_i32_70 dim 1 : vector<16x128xf32>, i32 -> vector<16x128xf32>
    %169 = arith.mulf %167, %168 : vector<16x128xf32>
    %c4_i32_71 = arith.constant 4 : i32
    %170 = tpu.dynamic_rotate %169 by %c4_i32_71 dim 1 : vector<16x128xf32>, i32 -> vector<16x128xf32>
    %171 = arith.mulf %169, %170 : vector<16x128xf32>
    %c8_i32_72 = arith.constant 8 : i32
    %172 = tpu.dynamic_rotate %171 by %c8_i32_72 dim 1 : vector<16x128xf32>, i32 -> vector<16x128xf32>
    %173 = arith.mulf %171, %172 : vector<16x128xf32>
    %c16_i32_73 = arith.constant 16 : i32
    %174 = tpu.dynamic_rotate %173 by %c16_i32_73 dim 1 : vector<16x128xf32>, i32 -> vector<16x128xf32>
    %175 = arith.mulf %173, %174 : vector<16x128xf32>
    %c32_i32_74 = arith.constant 32 : i32
    %176 = tpu.dynamic_rotate %175 by %c32_i32_74 dim 1 : vector<16x128xf32>, i32 -> vector<16x128xf32>
    %177 = arith.mulf %175, %176 : vector<16x128xf32>
    %c64_i32_75 = arith.constant 64 : i32
    %178 = tpu.dynamic_rotate %177 by %c64_i32_75 dim 1 : vector<16x128xf32>, i32 -> vector<16x128xf32>
    %179 = arith.mulf %177, %178 : vector<16x128xf32>
    %c1_i32_76 = arith.constant 1 : i32
    %180 = tpu.dynamic_rotate %165 by %c1_i32_76 dim 1 : vector<16x128xf32>, i32 -> vector<16x128xf32>
    %181 = arith.addf %165, %180 : vector<16x128xf32>
    %c2_i32_77 = arith.constant 2 : i32
    %182 = tpu.dynamic_rotate %181 by %c2_i32_77 dim 1 : vector<16x128xf32>, i32 -> vector<16x128xf32>
    %183 = arith.addf %181, %182 : vector<16x128xf32>
    %c4_i32_78 = arith.constant 4 : i32
    %184 = tpu.dynamic_rotate %183 by %c4_i32_78 dim 1 : vector<16x128xf32>, i32 -> vector<16x128xf32>
    %185 = arith.addf %183, %184 : vector<16x128xf32>
    %c8_i32_79 = arith.constant 8 : i32
    %186 = tpu.dynamic_rotate %185 by %c8_i32_79 dim 1 : vector<16x128xf32>, i32 -> vector<16x128xf32>
    %187 = arith.addf %185, %186 : vector<16x128xf32>
    %c16_i32_80 = arith.constant 16 : i32
    %188 = tpu.dynamic_rotate %187 by %c16_i32_80 dim 1 : vector<16x128xf32>, i32 -> vector<16x128xf32>
    %189 = arith.addf %187, %188 : vector<16x128xf32>
    %c32_i32_81 = arith.constant 32 : i32
    %190 = tpu.dynamic_rotate %189 by %c32_i32_81 dim 1 : vector<16x128xf32>, i32 -> vector<16x128xf32>
    %191 = arith.addf %189, %190 : vector<16x128xf32>
    %c64_i32_82 = arith.constant 64 : i32
    %192 = tpu.dynamic_rotate %191 by %c64_i32_82 dim 1 : vector<16x128xf32>, i32 -> vector<16x128xf32>
    %193 = arith.addf %191, %192 : vector<16x128xf32>
    %cst_83 = arith.constant 1.000000e+00 : f32
    %194 = vector.broadcast %cst_83 : f32 to vector<16x128xf32>
    %195 = arith.cmpf ogt, %193, %194 : vector<16x128xf32>
    %cst_84 = arith.constant 0.000000e+00 : f32
    %196 = vector.broadcast %cst_84 : f32 to vector<16x128xf32>
    %197 = arith.select %195, %196, %179 : vector<16x128xi1>, vector<16x128xf32>
    %cst_85 = arith.constant 0.000000e+00 : f32
    %198 = vector.broadcast %cst_85 : f32 to vector<16x128xf32>
    %199 = arith.cmpf ogt, %193, %198 : vector<16x128xf32>
    %200 = arith.divf %179, %162 : vector<16x128xf32>
    %cst_86 = arith.constant 0.000000e+00 : f32
    %201 = vector.broadcast %cst_86 : f32 to vector<16x128xf32>
    %202 = arith.select %199, %201, %200 : vector<16x128xi1>, vector<16x128xf32>
    %203 = arith.select %160, %197, %202 : vector<16x128xi1>, vector<16x128xf32>
    %cst_87 = arith.constant 0.000000e+00 : f32
    %204 = vector.shape_cast %16 : vector<16x1xi1> to vector<16x1xi1>
    %205 = vector.broadcast %204 : vector<16x1xi1> to vector<16x128xi1>
    %206 = vector.broadcast %cst_87 : f32 to vector<16x128xf32>
    %207 = arith.select %205, %203, %206 : vector<16x128xi1>, vector<16x128xf32>
    %cst_88 = arith.constant 1.000000e+00 : f32
    %208 = vector.broadcast %cst_88 : f32 to vector<16x128xf32>
    %209 = arith.addf %208, %207 : vector<16x128xf32>
    %cst_89 = arith.constant 1.000000e+00 : f32
    %210 = vector.broadcast %cst_89 : f32 to vector<16x128xf32>
    %211 = arith.subf %210, %207 : vector<16x128xf32>
    %212 = arith.divf %209, %211 : vector<16x128xf32>
    %213 = math.log %212 : vector<16x128xf32>
    %214 = vector.broadcast %12 : vector<16x1xf32> to vector<16x128xf32>
    %215 = arith.mulf %214, %213 : vector<16x128xf32>
    %216 = arith.mulf %6, %215 : vector<16x128xf32>
    %cst_90 = arith.constant dense<0.000000e+00> : vector<128xf32>
    %217 = vector.multi_reduction <add>, %216, %cst_90 [0] : vector<16x128xf32> to vector<128xf32>
    %218 = vector.shape_cast %217 : vector<128xf32> to vector<1x128xf32>
    %219 = arith.addf %5, %218 : vector<1x128xf32>
    %220 = math.absf %219 : vector<1x128xf32>
    %cst_91 = arith.constant 0.000000e+00 : f32
    %221 = vector.broadcast %cst_91 : f32 to vector<1x128xf32>
    %222 = arith.subf %221, %220 : vector<1x128xf32>
    %223 = math.exp %222 : vector<1x128xf32>
    %cst_92 = arith.constant 0.000000e+00 : f32
    %224 = vector.broadcast %cst_92 : f32 to vector<1x128xf32>
    %225 = arith.cmpf oge, %219, %224 : vector<1x128xf32>
    %cst_93 = arith.constant 1.000000e+00 : f32
    %226 = vector.broadcast %cst_93 : f32 to vector<1x128xf32>
    %227 = arith.addf %226, %223 : vector<1x128xf32>
    %228 = arith.divf %223, %227 : vector<1x128xf32>
    %cst_94 = arith.constant 1.000000e+00 : f32
    %229 = vector.broadcast %cst_94 : f32 to vector<1x128xf32>
    %230 = arith.addf %229, %223 : vector<1x128xf32>
    %cst_95 = arith.constant 1.000000e+00 : f32
    %231 = vector.broadcast %cst_95 : f32 to vector<1x128xf32>
    %232 = arith.divf %231, %230 : vector<1x128xf32>
    %233 = arith.select %225, %228, %232 : vector<1x128xi1>, vector<1x128xf32>
    %234 = vector.shape_cast %233 : vector<1x128xf32> to vector<1x128xf32>
    %235 = vector.broadcast %234 : vector<1x128xf32> to vector<8x128xf32>
    %c0_96 = arith.constant 0 : index
    %c0_97 = arith.constant 0 : index
    %236 = vector.load %arg5[%c0_96, %c0_97] : memref<8x128xf32, #tpu.memory_space<vmem>>, vector<8x128xf32>
    tpu.vector_store %arg5[%c0_96, %c0_97], %235 {strides = array<i32>} : memref<8x128xf32, #tpu.memory_space<vmem>>, vector<8x128xf32>,
    return
  }
}

</mosaic_0001>

<llo_original>
// kernel: tpu_custom_call.1
$region0: #{tpu_custom_call.1}
  #allocation0 [shape = 'u32[]', space=smem, size = 0x4, offset = 0x4, fixed_abs, tag = 'smem constant byte address 0x4 - core index']
  #allocation1 [shape = 'u32[144,128]{1,0:T(1,128)}', space=vmem, size = 0x12000, scoped, tag = 'internal scratch']
  %s0 = inlined_call_operand.vmem [shape: f32[1,128], index: 0, kind: input, shape index: {}]
  %s1 = inlined_call_operand.vmem [shape: f32[1,128], index: 1, kind: input, shape index: {}]
  %s2 = inlined_call_operand.vmem [shape: f32[16,128], index: 2, kind: input, shape index: {}]
  %s3 = inlined_call_operand.hbm [shape: f32[16,128], index: 3, kind: input, shape index: {}]
  %s4 = inlined_call_operand.vmem [shape: f32[16,1], index: 4, kind: input, shape index: {}]
  %s5 = inlined_call_operand.hbm [shape: f32[8,128], index: 5, kind: output, shape index: {}]
  %s6 = sld [smem:[#allocation0]]
  $region34: #{tpu_custom_call.1} parent=0
    _
  %s8 = ssub.s32 1, %s6
  %s9 = scalar_select 0, %s8, %s6
  $region1: #{tpu_custom_call.1} parent=0
    #allocation2 [shape = 'u8[8192]{0}', space=vmem, size = 0x2000, scoped, tag = 'input window, operand 3, single buffered']
    #allocation3 [shape = 's32[1]{0}', space=sflag, size = 0x4, scoped, tag = 'scoped memory for tpu_custom_call.1']
    #allocation4 [shape = 's32[1]{0}', space=sflag, size = 0x4, scoped, tag = 'scoped memory for tpu_custom_call.1']
    #allocation5 [shape = 'u8[4096]{0}', space=vmem, size = 0x1000, scoped, tag = 'output window, operand 0, single buffered']
    %10 = vsyncpa [#allocation3], 0
    %11 = vsyncpa [#allocation4], 0
    // Predicated region
    $region2: #{tpu_custom_call.1} parent=1 // pred_check
      _
    $region3: #{tpu_custom_call.1} parent=1 // pred_check_branch
      %13 = sbr.rel (0) target = $region5
    $region4: #{tpu_custom_call.1} parent=1 // pred_region
      _
    $region5: #{tpu_custom_call.1} parent=1 // pred_fallthru
      _
    // Predicated region
    $region6: #{tpu_custom_call.1} parent=1 // pred_check
      _
    $region7: #{tpu_custom_call.1} parent=1 // pred_check_branch
      %15 = sbr.rel (0) target = $region9
    $region8: #{tpu_custom_call.1} parent=1 // pred_region
      _
    $region9: #{tpu_custom_call.1} parent=1 // pred_fallthru
      _
    // Predicated region
    $region10: #{tpu_custom_call.1} parent=1 // pred_check
      _
    $region11: #{tpu_custom_call.1} parent=1 // pred_check_branch
      %17 = sbr.rel (0) target = $region13
    $region12: #{tpu_custom_call.1} parent=1 // pred_region
      _
    $region13: #{tpu_custom_call.1} parent=1 // pred_fallthru
      _
    // Predicated region
    $region14: #{tpu_custom_call.1} parent=1 // pred_check
      _
    $region15: #{tpu_custom_call.1} parent=1 // pred_check_branch
      %19 = sbr.rel (0) target = $region17
    $region16: #{tpu_custom_call.1} parent=1 // pred_region
      %s21 = ssub.s32 256, 256
      %22 = vsyncadd [#allocation3], %s21
      %s23 = sshll.u32 [#allocation2], 4
      %s24 = int_to_ptr.vmem [resolvable:$true] %s23
      %29 = dma.hbm_to_vmem [thread:$0]  %s3, 256, %s24, [#allocation3], 128, 128, 8
    $region17: #{tpu_custom_call.1} parent=1 // pred_fallthru
      _
    // Predicated region
    $region18: #{tpu_custom_call.1} parent=1 // pred_check
      _
    $region19: #{tpu_custom_call.1} parent=1 // pred_check_branch
      %31 = sbr.rel (0) target = $region21
    $region20: #{tpu_custom_call.1} parent=1 // pred_region
      _
    $region21: #{tpu_custom_call.1} parent=1 // pred_fallthru
      _
    // Predicated region
    $region22: #{tpu_custom_call.1} parent=1 // pred_check
      _
    $region23: #{tpu_custom_call.1} parent=1 // pred_check_branch
      %33 = sbr.rel (0) target = $region25
    $region24: #{tpu_custom_call.1} parent=1 // pred_region
      %34 = dma.done [#allocation3], 256
    $region25: #{tpu_custom_call.1} parent=1 // pred_fallthru
      _
    %v35 = vld [vmem:[%s0] sm:$0x1]
    %v36 = vld [vmem:[%s1] sm:$0x1]
    %v37 = vld [vmem:[%s2] sm:$0xff]
    %v38 = vld [vmem:[%s2 + $0x8] sm:$0xff]
    %v39 = vld [vmem:[#allocation2] sm:$0xff]
    %v40 = vld [vmem:[#allocation2 + $0x8] sm:$0xff]
    %v41 = vld [vmem:[%s4] sm:$0xff]
    %v42 = vld [vmem:[%s4 + $0x8] sm:$0xff]
    %v43 = vmul.f32 %v35, %v36
    %v44 = vmul.f32 %v37, %v39
    %v45 = vmul.f32 %v38, %v40
    %vm46 = vcmp.eq.f32.partialorder %v37, 1.0
    %vm47 = vcmp.eq.f32.partialorder %v38, 1.0
    %v48 = vmul.f32 %v41, 2.0
    %v49 = vmul.f32 %v42, 2.0
    %v50 = vsub.f32 1.0, %v48
    %v51 = vsub.f32 1.0, %v49
    %52 = vmax.xlane.f32.xlu0 %v37
    %v53 = vpop.xlane.xlu0 %52
    %54 = vmax.xlane.f32.xlu0 %v38
    %v55 = vpop.xlane.xlu0 %54
    %vm56 = vcmp.gt.f32.partialorder %v53, 0.0
    %vm57 = vcmp.gt.f32.partialorder %v55, 0.0
    %v58 = vsel %vm46, 0.0, 1.0
    %v59 = vsel %vm47, 0.0, 1.0
    %vm60 = vcmp.eq.f32.partialorder %v58, 0.0
    %vm61 = vcmp.eq.f32.partialorder %v59, 0.0
    %v62 = vsel %vm60, 1.0, %v58
    %v63 = vsel %vm61, 1.0, %v59
    %v64 = vsel %vm60, 1.0, 0.0
    %v65 = vsel %vm61, 1.0, 0.0
    %66 = vrot.lane.b32.xlu0 %v62, 1
    %v67 = vpop.permute.xlu0 %66
    %68 = vrot.lane.b32.xlu0 %v63, 1
    %v69 = vpop.permute.xlu0 %68
    %v70 = vmul.f32 %v62, %v67
    %v71 = vmul.f32 %v63, %v69
    %72 = vrot.lane.b32.xlu0 %v70, 2
    %v73 = vpop.permute.xlu0 %72
    %74 = vrot.lane.b32.xlu0 %v71, 2
    %v75 = vpop.permute.xlu0 %74
    %v76 = vmul.f32 %v70, %v73
    %v77 = vmul.f32 %v71, %v75
    %78 = vrot.lane.b32.xlu0 %v76, 4
    %v79 = vpop.permute.xlu0 %78
    %80 = vrot.lane.b32.xlu0 %v77, 4
    %v81 = vpop.permute.xlu0 %80
    %v82 = vmul.f32 %v76, %v79
    %v83 = vmul.f32 %v77, %v81
    %84 = vrot.lane.b32.xlu0 %v82, 8
    %v85 = vpop.permute.xlu0 %84
    %86 = vrot.lane.b32.xlu0 %v83, 8
    %v87 = vpop.permute.xlu0 %86
    %v88 = vmul.f32 %v82, %v85
    %v89 = vmul.f32 %v83, %v87
    %90 = vrot.lane.b32.xlu0 %v88, 16
    %v91 = vpop.permute.xlu0 %90
    %92 = vrot.lane.b32.xlu0 %v89, 16
    %v93 = vpop.permute.xlu0 %92
    %v94 = vmul.f32 %v88, %v91
    %v95 = vmul.f32 %v89, %v93
    %96 = vrot.lane.b32.xlu0 %v94, 32
    %v97 = vpop.permute.xlu0 %96
    %98 = vrot.lane.b32.xlu0 %v95, 32
    %v99 = vpop.permute.xlu0 %98
    %v100 = vmul.f32 %v94, %v97
    %v101 = vmul.f32 %v95, %v99
    %102 = vrot.lane.b32.xlu0 %v100, 64
    %v103 = vpop.permute.xlu0 %102
    %104 = vrot.lane.b32.xlu0 %v101, 64
    %v105 = vpop.permute.xlu0 %104
    %v106 = vmul.f32 %v100, %v103
    %v107 = vmul.f32 %v101, %v105
    %108 = vrot.lane.b32.xlu0 %v64, 1
    %v109 = vpop.permute.xlu0 %108
    %110 = vrot.lane.b32.xlu0 %v65, 1
    %v111 = vpop.permute.xlu0 %110
    %v112 = vadd.f32 %v64, %v109
    %v113 = vadd.f32 %v65, %v111
    %114 = vrot.lane.b32.xlu0 %v112, 2
    %v115 = vpop.permute.xlu0 %114
    %116 = vrot.lane.b32.xlu0 %v113, 2
    %v117 = vpop.permute.xlu0 %116
    %v118 = vadd.f32 %v112, %v115
    %v119 = vadd.f32 %v113, %v117
    %120 = vrot.lane.b32.xlu0 %v118, 4
    %v121 = vpop.permute.xlu0 %120
    %122 = vrot.lane.b32.xlu0 %v119, 4
    %v123 = vpop.permute.xlu0 %122
    %v124 = vadd.f32 %v118, %v121
    %v125 = vadd.f32 %v119, %v123
    %126 = vrot.lane.b32.xlu0 %v124, 8
    %v127 = vpop.permute.xlu0 %126
    %128 = vrot.lane.b32.xlu0 %v125, 8
    %v129 = vpop.permute.xlu0 %128
    %v130 = vadd.f32 %v124, %v127
    %v131 = vadd.f32 %v125, %v129
    %132 = vrot.lane.b32.xlu0 %v130, 16
    %v133 = vpop.permute.xlu0 %132
    %134 = vrot.lane.b32.xlu0 %v131, 16
    %v135 = vpop.permute.xlu0 %134
    %v136 = vadd.f32 %v130, %v133
    %v137 = vadd.f32 %v131, %v135
    %138 = vrot.lane.b32.xlu0 %v136, 32
    %v139 = vpop.permute.xlu0 %138
    %140 = vrot.lane.b32.xlu0 %v137, 32
    %v141 = vpop.permute.xlu0 %140
    %v142 = vadd.f32 %v136, %v139
    %v143 = vadd.f32 %v137, %v141
    %144 = vrot.lane.b32.xlu0 %v142, 64
    %v145 = vpop.permute.xlu0 %144
    %146 = vrot.lane.b32.xlu0 %v143, 64
    %v147 = vpop.permute.xlu0 %146
    %v148 = vadd.f32 %v142, %v145
    %v149 = vadd.f32 %v143, %v147
    %vm150 = vcmp.gt.f32.partialorder %v148, 1.0
    %vm151 = vcmp.gt.f32.partialorder %v149, 1.0
    %v152 = vsel %vm150, 0.0, %v106
    %v153 = vsel %vm151, 0.0, %v107
    %vm154 = vcmp.gt.f32.partialorder %v148, 0.0
    %vm155 = vcmp.gt.f32.partialorder %v149, 0.0
    %v156 = vrcp.pop %v62
    %v157 = vmul.f32 %v106, %v156
    %v158 = vrcp.pop %v63
    %v159 = vmul.f32 %v107, %v158
    %v160 = vsel %vm154, 0.0, %v157
    %v161 = vsel %vm155, 0.0, %v159
    %v162 = vsel %vm60, %v152, %v160
    %v163 = vsel %vm61, %v153, %v161
    %v164 = vsel %vm56, 1, 0
    %v165 = vsel %vm57, 1, 0
    %vm166 = vcmp.eq.s32.totalorder %v164, 1
    %vm167 = vcmp.eq.s32.totalorder %v165, 1
    %v168 = vsel %vm166, %v162, 0.0
    %v169 = vsel %vm167, %v163, 0.0
    %v170 = vadd.f32 %v168, 1.0
    %v171 = vadd.f32 %v169, 1.0
    %v172 = vsub.f32 1.0, %v168
    %v173 = vsub.f32 1.0, %v169
    %v174 = vrcp.pop %v172
    %v175 = vmul.f32 %v170, %v174
    %v176 = vrcp.pop %v173
    %v177 = vmul.f32 %v171, %v176
    %v178 = vlog2.pop %v175
    %v179 = vmul.f32 %v178, 0.6931472
    %v180 = vlog2.pop %v177
    %v181 = vmul.f32 %v180, 0.6931472
    %183 = vset.pattern.permute.xlu0 0
    %184 = vperm.xlu0 %183, %v50
    %v185 = vpop.permute.xlu0 %184
    %188 = vset.pattern.permute.xlu0 0
    %189 = vperm.xlu0 %188, %v51
    %v190 = vpop.permute.xlu0 %189
    %v192 = vmul.f32 %v185, %v179
    %v193 = vmul.f32 %v190, %v181
    %v194 = vmul.f32 %v44, %v192
    %v195 = vmul.f32 %v45, %v193
    %v196 = vadd.f32 %v194, %v195
    %v197 = vrot.slane %v196, 4
    %v198 = vadd.f32 %v196, %v197
    %v199 = vrot.slane %v198, 2
    %v200 = vadd.f32 %v198, %v199
    %v201 = vrot.slane %v200, 1
    %v202 = vadd.f32 %v200, %v201
    %v203 = vadd.f32 %v43, %v202
    %v205 = vlaneseq
    %v206 = vshrl.u32 %v205, 7
    %v207 = vsub.s32 0, %v206
    %v208 = vrot.slane %v203, %v207
    %v210 = vsub.f32 %v208, %v194
    %v211 = vsub.f32 %v208, %v195
    %v212 = vmul.f32 %v210, 0.5
    %v213 = vmul.f32 %v211, 0.5
    %v214 = vtanh.pop %v212
    %v215 = vtanh.pop %v213
    %v216 = vsel %vm46, %v214, 1.0
    %v217 = vsel %vm47, %v215, 1.0
    %vm218 = vcmp.eq.f32.partialorder %v216, 0.0
    %vm219 = vcmp.eq.f32.partialorder %v217, 0.0
    %v220 = vsel %vm218, 1.0, %v216
    %v221 = vsel %vm219, 1.0, %v217
    %v222 = vsel %vm218, 1.0, 0.0
    %v223 = vsel %vm219, 1.0, 0.0
    %224 = vrot.lane.b32.xlu0 %v220, 1
    %v225 = vpop.permute.xlu0 %224
    %226 = vrot.lane.b32.xlu0 %v221, 1
    %v227 = vpop.permute.xlu0 %226
    %v228 = vmul.f32 %v220, %v225
    %v229 = vmul.f32 %v221, %v227
    %230 = vrot.lane.b32.xlu0 %v228, 2
    %v231 = vpop.permute.xlu0 %230
    %232 = vrot.lane.b32.xlu0 %v229, 2
    %v233 = vpop.permute.xlu0 %232
    %v234 = vmul.f32 %v228, %v231
    %v235 = vmul.f32 %v229, %v233
    %236 = vrot.lane.b32.xlu0 %v234, 4
    %v237 = vpop.permute.xlu0 %236
    %238 = vrot.lane.b32.xlu0 %v235, 4
    %v239 = vpop.permute.xlu0 %238
    %v240 = vmul.f32 %v234, %v237
    %v241 = vmul.f32 %v235, %v239
    %242 = vrot.lane.b32.xlu0 %v240, 8
    %v243 = vpop.permute.xlu0 %242
    %244 = vrot.lane.b32.xlu0 %v241, 8
    %v245 = vpop.permute.xlu0 %244
    %v246 = vmul.f32 %v240, %v243
    %v247 = vmul.f32 %v241, %v245
    %248 = vrot.lane.b32.xlu0 %v246, 16
    %v249 = vpop.permute.xlu0 %248
    %250 = vrot.lane.b32.xlu0 %v247, 16
    %v251 = vpop.permute.xlu0 %250
    %v252 = vmul.f32 %v246, %v249
    %v253 = vmul.f32 %v247, %v251
    %254 = vrot.lane.b32.xlu0 %v252, 32
    %v255 = vpop.permute.xlu0 %254
    %256 = vrot.lane.b32.xlu0 %v253, 32
    %v257 = vpop.permute.xlu0 %256
    %v258 = vmul.f32 %v252, %v255
    %v259 = vmul.f32 %v253, %v257
    %260 = vrot.lane.b32.xlu0 %v258, 64
    %v261 = vpop.permute.xlu0 %260
    %262 = vrot.lane.b32.xlu0 %v259, 64
    %v263 = vpop.permute.xlu0 %262
    %v264 = vmul.f32 %v258, %v261
    %v265 = vmul.f32 %v259, %v263
    %266 = vrot.lane.b32.xlu0 %v222, 1
    %v267 = vpop.permute.xlu0 %266
    %268 = vrot.lane.b32.xlu0 %v223, 1
    %v269 = vpop.permute.xlu0 %268
    %v270 = vadd.f32 %v222, %v267
    %v271 = vadd.f32 %v223, %v269
    %272 = vrot.lane.b32.xlu0 %v270, 2
    %v273 = vpop.permute.xlu0 %272
    %274 = vrot.lane.b32.xlu0 %v271, 2
    %v275 = vpop.permute.xlu0 %274
    %v276 = vadd.f32 %v270, %v273
    %v277 = vadd.f32 %v271, %v275
    %278 = vrot.lane.b32.xlu0 %v276, 4
    %v279 = vpop.permute.xlu0 %278
    %280 = vrot.lane.b32.xlu0 %v277, 4
    %v281 = vpop.permute.xlu0 %280
    %v282 = vadd.f32 %v276, %v279
    %v283 = vadd.f32 %v277, %v281
    %284 = vrot.lane.b32.xlu0 %v282, 8
    %v285 = vpop.permute.xlu0 %284
    %286 = vrot.lane.b32.xlu0 %v283, 8
    %v287 = vpop.permute.xlu0 %286
    %v288 = vadd.f32 %v282, %v285
    %v289 = vadd.f32 %v283, %v287
    %290 = vrot.lane.b32.xlu0 %v288, 16
    %v291 = vpop.permute.xlu0 %290
    %292 = vrot.lane.b32.xlu0 %v289, 16
    %v293 = vpop.permute.xlu0 %292
    %v294 = vadd.f32 %v288, %v291
    %v295 = vadd.f32 %v289, %v293
    %296 = vrot.lane.b32.xlu0 %v294, 32
    %v297 = vpop.permute.xlu0 %296
    %298 = vrot.lane.b32.xlu0 %v295, 32
    %v299 = vpop.permute.xlu0 %298
    %v300 = vadd.f32 %v294, %v297
    %v301 = vadd.f32 %v295, %v299
    %302 = vrot.lane.b32.xlu0 %v300, 64
    %v303 = vpop.permute.xlu0 %302
    %304 = vrot.lane.b32.xlu0 %v301, 64
    %v305 = vpop.permute.xlu0 %304
    %v306 = vadd.f32 %v300, %v303
    %v307 = vadd.f32 %v301, %v305
    %vm308 = vcmp.gt.f32.partialorder %v306, 1.0
    %vm309 = vcmp.gt.f32.partialorder %v307, 1.0
    %v310 = vsel %vm308, 0.0, %v264
    %v311 = vsel %vm309, 0.0, %v265
    %vm312 = vcmp.gt.f32.partialorder %v306, 0.0
    %vm313 = vcmp.gt.f32.partialorder %v307, 0.0
    %v314 = vrcp.pop %v220
    %v315 = vmul.f32 %v264, %v314
    %v316 = vrcp.pop %v221
    %v317 = vmul.f32 %v265, %v316
    %v318 = vsel %vm312, 0.0, %v315
    %v319 = vsel %vm313, 0.0, %v317
    %v320 = vsel %vm218, %v310, %v318
    %v321 = vsel %vm219, %v311, %v319
    %v322 = vsel %vm166, %v320, 0.0
    %v323 = vsel %vm167, %v321, 0.0
    %v324 = vadd.f32 %v322, 1.0
    %v325 = vadd.f32 %v323, 1.0
    %v326 = vsub.f32 1.0, %v322
    %v327 = vsub.f32 1.0, %v323
    %v328 = vrcp.pop %v326
    %v329 = vmul.f32 %v324, %v328
    %v330 = vrcp.pop %v327
    %v331 = vmul.f32 %v325, %v330
    %v332 = vlog2.pop %v329
    %v333 = vmul.f32 %v332, 0.6931472
    %v334 = vlog2.pop %v331
    %v335 = vmul.f32 %v334, 0.6931472
    %v336 = vmul.f32 %v185, %v333
    %v337 = vmul.f32 %v190, %v335
    %v338 = vmul.f32 %v44, %v336
    %v339 = vmul.f32 %v45, %v337
    %v340 = vadd.f32 %v338, %v339
    %v341 = vrot.slane %v340, 4
    %v342 = vadd.f32 %v340, %v341
    %v343 = vrot.slane %v342, 2
    %v344 = vadd.f32 %v342, %v343
    %v345 = vrot.slane %v344, 1
    %v346 = vadd.f32 %v344, %v345
    %v347 = vadd.f32 %v43, %v346
    %v349 = vlaneseq
    %v350 = vshrl.u32 %v349, 7
    %v351 = vsub.s32 0, %v350
    %v352 = vrot.slane %v347, %v351
    %v354 = vsub.f32 %v352, %v338
    %v355 = vsub.f32 %v352, %v339
    %v356 = vmul.f32 %v354, 0.5
    %v357 = vmul.f32 %v355, 0.5
    %v358 = vtanh.pop %v356
    %v359 = vtanh.pop %v357
    %v360 = vsel %vm46, %v358, 1.0
    %v361 = vsel %vm47, %v359, 1.0
    %vm362 = vcmp.eq.f32.partialorder %v360, 0.0
    %vm363 = vcmp.eq.f32.partialorder %v361, 0.0
    %v364 = vsel %vm362, 1.0, %v360
    %v365 = vsel %vm363, 1.0, %v361
    %v366 = vsel %vm362, 1.0, 0.0
    %v367 = vsel %vm363, 1.0, 0.0
    %368 = vrot.lane.b32.xlu0 %v364, 1
    %v369 = vpop.permute.xlu0 %368
    %370 = vrot.lane.b32.xlu0 %v365, 1
    %v371 = vpop.permute.xlu0 %370
    %v372 = vmul.f32 %v364, %v369
    %v373 = vmul.f32 %v365, %v371
    %374 = vrot.lane.b32.xlu0 %v372, 2
    %v375 = vpop.permute.xlu0 %374
    %376 = vrot.lane.b32.xlu0 %v373, 2
    %v377 = vpop.permute.xlu0 %376
    %v378 = vmul.f32 %v372, %v375
    %v379 = vmul.f32 %v373, %v377
    %380 = vrot.lane.b32.xlu0 %v378, 4
    %v381 = vpop.permute.xlu0 %380
    %382 = vrot.lane.b32.xlu0 %v379, 4
    %v383 = vpop.permute.xlu0 %382
    %v384 = vmul.f32 %v378, %v381
    %v385 = vmul.f32 %v379, %v383
    %386 = vrot.lane.b32.xlu0 %v384, 8
    %v387 = vpop.permute.xlu0 %386
    %388 = vrot.lane.b32.xlu0 %v385, 8
    %v389 = vpop.permute.xlu0 %388
    %v390 = vmul.f32 %v384, %v387
    %v391 = vmul.f32 %v385, %v389
    %392 = vrot.lane.b32.xlu0 %v390, 16
    %v393 = vpop.permute.xlu0 %392
    %394 = vrot.lane.b32.xlu0 %v391, 16
    %v395 = vpop.permute.xlu0 %394
    %v396 = vmul.f32 %v390, %v393
    %v397 = vmul.f32 %v391, %v395
    %398 = vrot.lane.b32.xlu0 %v396, 32
    %v399 = vpop.permute.xlu0 %398
    %400 = vrot.lane.b32.xlu0 %v397, 32
    %v401 = vpop.permute.xlu0 %400
    %v402 = vmul.f32 %v396, %v399
    %v403 = vmul.f32 %v397, %v401
    %404 = vrot.lane.b32.xlu0 %v402, 64
    %v405 = vpop.permute.xlu0 %404
    %406 = vrot.lane.b32.xlu0 %v403, 64
    %v407 = vpop.permute.xlu0 %406
    %v408 = vmul.f32 %v402, %v405
    %v409 = vmul.f32 %v403, %v407
    %410 = vrot.lane.b32.xlu0 %v366, 1
    %v411 = vpop.permute.xlu0 %410
    %412 = vrot.lane.b32.xlu0 %v367, 1
    %v413 = vpop.permute.xlu0 %412
    %v414 = vadd.f32 %v366, %v411
    %v415 = vadd.f32 %v367, %v413
    %416 = vrot.lane.b32.xlu0 %v414, 2
    %v417 = vpop.permute.xlu0 %416
    %418 = vrot.lane.b32.xlu0 %v415, 2
    %v419 = vpop.permute.xlu0 %418
    %v420 = vadd.f32 %v414, %v417
    %v421 = vadd.f32 %v415, %v419
    %422 = vrot.lane.b32.xlu0 %v420, 4
    %v423 = vpop.permute.xlu0 %422
    %424 = vrot.lane.b32.xlu0 %v421, 4
    %v425 = vpop.permute.xlu0 %424
    %v426 = vadd.f32 %v420, %v423
    %v427 = vadd.f32 %v421, %v425
    %428 = vrot.lane.b32.xlu0 %v426, 8
    %v429 = vpop.permute.xlu0 %428
    %430 = vrot.lane.b32.xlu0 %v427, 8
    %v431 = vpop.permute.xlu0 %430
    %v432 = vadd.f32 %v426, %v429
    %v433 = vadd.f32 %v427, %v431
    %434 = vrot.lane.b32.xlu0 %v432, 16
    %v435 = vpop.permute.xlu0 %434
    %436 = vrot.lane.b32.xlu0 %v433, 16
    %v437 = vpop.permute.xlu0 %436
    %v438 = vadd.f32 %v432, %v435
    %v439 = vadd.f32 %v433, %v437
    %440 = vrot.lane.b32.xlu0 %v438, 32
    %v441 = vpop.permute.xlu0 %440
    %442 = vrot.lane.b32.xlu0 %v439, 32
    %v443 = vpop.permute.xlu0 %442
    %v444 = vadd.f32 %v438, %v441
    %v445 = vadd.f32 %v439, %v443
    %446 = vrot.lane.b32.xlu0 %v444, 64
    %v447 = vpop.permute.xlu0 %446
    %448 = vrot.lane.b32.xlu0 %v445, 64
    %v449 = vpop.permute.xlu0 %448
    %v450 = vadd.f32 %v444, %v447
    %v451 = vadd.f32 %v445, %v449
    %vm452 = vcmp.gt.f32.partialorder %v450, 1.0
    %vm453 = vcmp.gt.f32.partialorder %v451, 1.0
    %v454 = vsel %vm452, 0.0, %v408
    %v455 = vsel %vm453, 0.0, %v409
    %vm456 = vcmp.gt.f32.partialorder %v450, 0.0
    %vm457 = vcmp.gt.f32.partialorder %v451, 0.0
    %v458 = vrcp.pop %v364
    %v459 = vmul.f32 %v408, %v458
    %v460 = vrcp.pop %v365
    %v461 = vmul.f32 %v409, %v460
    %v462 = vsel %vm456, 0.0, %v459
    %v463 = vsel %vm457, 0.0, %v461
    %v464 = vsel %vm362, %v454, %v462
    %v465 = vsel %vm363, %v455, %v463
    %v466 = vsel %vm166, %v464, 0.0
    %v467 = vsel %vm167, %v465, 0.0
    %v468 = vadd.f32 %v466, 1.0
    %v469 = vadd.f32 %v467, 1.0
    %v470 = vsub.f32 1.0, %v466
    %v471 = vsub.f32 1.0, %v467
    %v472 = vrcp.pop %v470
    %v473 = vmul.f32 %v468, %v472
    %v474 = vrcp.pop %v471
    %v475 = vmul.f32 %v469, %v474
    %v476 = vlog2.pop %v473
    %v477 = vmul.f32 %v476, 0.6931472
    %v478 = vlog2.pop %v475
    %v479 = vmul.f32 %v478, 0.6931472
    %v480 = vmul.f32 %v185, %v477
    %v481 = vmul.f32 %v190, %v479
    %v482 = vmul.f32 %v44, %v480
    %v483 = vmul.f32 %v45, %v481
    %v484 = vadd.f32 %v482, %v483
    %v485 = vrot.slane %v484, 4
    %v486 = vadd.f32 %v484, %v485
    %v487 = vrot.slane %v486, 2
    %v488 = vadd.f32 %v486, %v487
    %v489 = vrot.slane %v488, 1
    %v490 = vadd.f32 %v488, %v489
    %v491 = vadd.f32 %v43, %v490
    %v492 = vand.u32 2147483647, %v491
    %v493 = vsub.f32 0.0, %v492
    %v494 = vmul.f32 %v493, 1.442695
    %v495 = vpow.pop %v494
    %vm496 = vcmp.ge.f32.partialorder %v491, 0.0
    %v497 = vadd.f32 %v495, 1.0
    %v498 = vrcp.pop %v497
    %v499 = vmul.f32 %v495, %v498
    %v500 = vmul.f32 1.0, %v498
    %v501 = vsel %vm496, %v499, %v500
    %v503 = vlaneseq
    %v504 = vshrl.u32 %v503, 7
    %v505 = vsub.s32 0, %v504
    %v506 = vrot.slane %v501, %v505
    %508 = vst [vmem:[#allocation5] sm:$0xff] %v506
    // Predicated region
    $region26: #{tpu_custom_call.1} parent=1 // pred_check
      _
    $region27: #{tpu_custom_call.1} parent=1 // pred_check_branch
      %510 = sbr.rel (0) target = $region29
    $region28: #{tpu_custom_call.1} parent=1 // pred_region
      %s512 = ssub.s32 128, 128
      %513 = vsyncadd [#allocation4], %s512
      %s515 = sshll.u32 [#allocation5], 4
      %s516 = int_to_ptr.vmem [resolvable:$true] %s515
      %518 = dma.vmem_to_hbm [thread:$0]  %s516, 128, %s5, [#allocation4]
    $region29: #{tpu_custom_call.1} parent=1 // pred_fallthru
      _
    // Predicated region
    $region30: #{tpu_custom_call.1} parent=1 // pred_check
      _
    $region31: #{tpu_custom_call.1} parent=1 // pred_check_branch
      %520 = sbr.rel (0) target = $region33
    $region32: #{tpu_custom_call.1} parent=1 // pred_region
      %521 = dma.done [#allocation4], 128
    $region33: #{tpu_custom_call.1} parent=1 // pred_fallthru
      _
    %522 = vsyncpa [#allocation3], 1
    %523 = vsyncpa [#allocation4], 1

</llo_original>
